<compile_context>
chip_gen: v7x
topology: tpu7x:2x2x1
jax: 0.10.0
libtpu: 0.0.40
codegen_flags: <defaults>
</compile_context>

<pallas_src>
import functools

import jax
import jax.numpy as jnp
from jax.experimental import pallas as pl
from jax.experimental.pallas import tpu as pltpu


def _mlp_seq_kernel(x_ref, w1_ref, b1_ref, w2_ref, b2_ref, o_ref, *,
                    compute_dtype):
    # x_ref:  (TM, D_in)     f32 row tile (cast to bf16 in-kernel, on the VPU)
    # w1_ref: (D_in, D_hid)  bf16 full weight (pre-transposed, i.e. torch W1.T)
    # b1_ref: (1, D_hid)     f32
    # w2_ref: (D_hid, D_out) bf16 full weight (torch W2.T)
    # b2_ref: (1, D_out)     f32
    # o_ref:  (TM, D_out)    f32
    x = x_ref[...].astype(compute_dtype)
    h = jnp.dot(x, w1_ref[...], preferred_element_type=jnp.float32)
    h = jnp.tanh(h + b1_ref[...])
    y = jnp.dot(h.astype(compute_dtype), w2_ref[...],
                preferred_element_type=jnp.float32)
    y = jnp.tanh(y + b2_ref[...])
    o_ref[...] = y.astype(o_ref.dtype)


def _is_v7x():
    """Best-effort detection of a 2-TensorCore-per-chip part."""
    try:
        kind = jax.devices()[0].device_kind.lower()
        return "v7" in kind
    except Exception:
        return False


def _tiling_plan(n_rows, d_in, d_hid, d_out, x_bytes, out_bytes,
                 compute_bytes):
    """Pick the row tile size and a safe VMEM limit."""
    try:
        vmem_cap = int(pltpu.get_tpu_info().vmem_capacity_bytes)
    except Exception:
        vmem_cap = 64 * 1024 * 1024  # v7x per-TC capacity: safe lower bound
    # Hard clamp: even if the query reports per-chip VMEM (128 MiB) on v7x,
    # stay well inside the 64 MiB per-TensorCore budget.
    budget = min(int(vmem_cap * 0.6), 48 * 1024 * 1024)

    # Grid-invariant weights/biases; BlockSpec double-buffers them, so count
    # them twice to stay conservative.
    fixed = (2 * (d_in * d_hid + d_hid * d_out) * compute_bytes
             + 2 * (d_hid + d_out) * 4)

    tile_m = 16384  # per-step overhead (~0.35 us) is the limiter, so go big
    while tile_m > 16:
        per_step = (2 * tile_m * d_in * x_bytes      # x tile, double-buffered
                    + 2 * tile_m * d_out * out_bytes  # out tile, double-buffered
                    + 4 * tile_m * d_hid * 4)         # f32 intermediates + headroom
        if fixed + per_step <= budget:
            break
        tile_m //= 2

    # Don't pad a small problem up to a huge tile: one block covering all rows
    # is optimal on single-TC chips (v5e/v6e).
    tile_m = min(tile_m, max(16, pl.next_power_of_2(max(n_rows, 1))))

    # v7x only: keep >= 2 grid steps (when the row count allows) so the
    # "parallel" grid axis can shard across both TensorCores.
    if _is_v7x():
        while tile_m > 16 and pl.cdiv(n_rows, tile_m) < 2:
            tile_m //= 2

    return tile_m, budget


@functools.partial(jax.jit, static_argnames=("compute_dtype",))
def mlp_seq_forward(emb, w1, b1, w2, b2, *, compute_dtype=jnp.bfloat16):
    """emb: (B, S, D_in) -> (B, S, D_out).

    w1: (D_in, D_hid), b1: (D_hid,), w2: (D_hid, D_out), b2: (D_out,)
    (w1/w2 are the transposes of the PyTorch nn.Linear weight matrices.)
    """
    B, S, D_in = emb.shape
    D_hid = w1.shape[1]
    D_out = w2.shape[1]
    N = B * S

    compute_bytes = jnp.dtype(compute_dtype).itemsize
    x_bytes = jnp.dtype(emb.dtype).itemsize
    out_bytes = jnp.dtype(emb.dtype).itemsize
    tile_m, vmem_limit = _tiling_plan(N, D_in, D_hid, D_out,
                                      x_bytes, out_bytes, compute_bytes)
    grid_m = pl.cdiv(N, tile_m)

    # No cast, no pad: the kernel DMAs f32 rows directly and casts on the VPU;
    # the ragged last block (if any) is masked on store.
    x2d = emb.reshape(N, D_in)

    w1c = w1.astype(compute_dtype)
    w2c = w2.astype(compute_dtype)
    b1_2d = b1.reshape(1, D_hid).astype(jnp.float32)
    b2_2d = b2.reshape(1, D_out).astype(jnp.float32)

    cost = pl.CostEstimate(
        flops=2 * N * (D_in * D_hid + D_hid * D_out),
        transcendentals=N * (D_hid + D_out),
        bytes_accessed=(N * D_in * x_bytes
                        + (D_in * D_hid + D_hid * D_out) * compute_bytes
                        + (D_hid + D_out) * 4
                        + N * D_out * out_bytes),
    )

    out2d = pl.pallas_call(
        functools.partial(_mlp_seq_kernel, compute_dtype=compute_dtype),
        out_shape=jax.ShapeDtypeStruct((N, D_out), emb.dtype),
        grid_spec=pltpu.PrefetchScalarGridSpec(
            num_scalar_prefetch=0,
            grid=(grid_m,),
            in_specs=[
                pl.BlockSpec((tile_m, D_in), lambda i: (i, 0)),   # x row tile
                pl.BlockSpec((D_in, D_hid), lambda i: (0, 0)),    # w1 (resident)
                pl.BlockSpec((1, D_hid), lambda i: (0, 0)),       # b1
                pl.BlockSpec((D_hid, D_out), lambda i: (0, 0)),   # w2 (resident)
                pl.BlockSpec((1, D_out), lambda i: (0, 0)),       # b2
            ],
            out_specs=pl.BlockSpec((tile_m, D_out), lambda i: (i, 0)),
        ),
        compiler_params=pltpu.CompilerParams(
            dimension_semantics=("parallel",),
            vmem_limit_bytes=int(vmem_limit),
        ),
        cost_estimate=cost,
    )(x2d, w1c, b1_2d, w2c, b2_2d)

    return out2d.reshape(B, S, D_out)


def init_params(key, input_size, output_size, dtype=jnp.float32):
    """Deterministic init matching nn.Linear's shapes (Kaiming-uniform-ish)."""
    hidden = input_size // 2
    k1, k2, k3, k4 = jax.random.split(key, 4)

    bound1 = 1.0 / (input_size ** 0.5)
    # stored as (in, out) == torch weight.T
    w1 = jax.random.uniform(k1, (input_size, hidden), dtype, -bound1, bound1)
    b1 = jax.random.uniform(k2, (hidden,), dtype, -bound1, bound1)

    bound2 = 1.0 / (hidden ** 0.5)
    w2 = jax.random.uniform(k3, (hidden, output_size), dtype, -bound2, bound2)
    b2 = jax.random.uniform(k4, (output_size,), dtype, -bound2, bound2)
    return w1, b1, w2, b2


def reference_forward(emb, w1, b1, w2, b2):
    h = jnp.tanh(emb @ w1 + b1)
    return jnp.tanh(h @ w2 + b2)


if __name__ == "__main__":
    key = jax.random.PRNGKey(0)
    k_x, k_p = jax.random.split(key)

    # Small shapes: batch=2, seq=8, input_size=32, output_size=8
    B, S, INPUT_SIZE, OUTPUT_SIZE = 2, 8, 32, 8
    emb = jax.random.normal(k_x, (B, S, INPUT_SIZE), dtype=jnp.float32)

    w1, b1, w2, b2 = init_params(k_p, INPUT_SIZE, OUTPUT_SIZE)

    out = mlp_seq_forward(emb, w1, b1, w2, b2)
    out = jax.block_until_ready(out)

    ref = reference_forward(emb, w1, b1, w2, b2)
    assert out.shape == (B, S, OUTPUT_SIZE), out.shape
    assert jnp.all(jnp.isfinite(out)), "non-finite values in kept rows"
    # bf16 MXU inputs with f32 accumulation -> compare against the f32
    # reference with a bf16-appropriate tolerance.
    assert jnp.allclose(out, ref, atol=2e-2, rtol=2e-2), "mismatch vs reference"

    print("KERNEL_OK")
</pallas_src>

<mosaic_0001>
module attributes {stable_mosaic.version = 11 : i64} {
  func.func @_mlp_seq_kernel(%arg0: i32, %arg1: memref<16x32xf32, #tpu.memory_space<vmem>>, %arg2: memref<32x16xbf16, #tpu.memory_space<vmem>>, %arg3: memref<1x16xf32, #tpu.memory_space<vmem>>, %arg4: memref<16x8xbf16, #tpu.memory_space<vmem>>, %arg5: memref<1x8xf32, #tpu.memory_space<vmem>>, %arg6: memref<16x8xf32, #tpu.memory_space<vmem>>) attributes {dimension_semantics = [#tpu.dimension_semantics<parallel>], iteration_bounds = array<i64: 1>, scalar_prefetch = 0 : i64, scratch_operands = 0 : i64, tpu.core_type = #tpu.core_type<tc>, window_params = [{transform_indices = @transform_0, window_bounds = array<i64: 16, 32>}, {pipeline_mode = #tpu.pipeline_mode<synchronous>, transform_indices = @transform_1, window_bounds = array<i64: 32, 16>}, {pipeline_mode = #tpu.pipeline_mode<synchronous>, transform_indices = @transform_2, window_bounds = array<i64: 1, 16>}, {pipeline_mode = #tpu.pipeline_mode<synchronous>, transform_indices = @transform_3, window_bounds = array<i64: 16, 8>}, {pipeline_mode = #tpu.pipeline_mode<synchronous>, transform_indices = @transform_4, window_bounds = array<i64: 1, 8>}, {transform_indices = @transform_5, window_bounds = array<i64: 16, 8>}]} {
    %c0 = arith.constant 0 : index
    %c0_0 = arith.constant 0 : index
    %0 = vector.load %arg1[%c0, %c0_0] : memref<16x32xf32, #tpu.memory_space<vmem>>, vector<16x32xf32>
    %1 = arith.truncf %0 : vector<16x32xf32> to vector<16x32xbf16>
    %c0_1 = arith.constant 0 : index
    %c0_2 = arith.constant 0 : index
    %2 = vector.load %arg2[%c0_1, %c0_2] : memref<32x16xbf16, #tpu.memory_space<vmem>>, vector<32x16xbf16>
    %cst = arith.constant dense<0.000000e+00> : vector<16x16xf32>
    %3 = tpu.matmul %1, %2, %cst {dimension_numbers = #tpu.dot_dimension_numbers<[1], [0], [0], [1], [0, 0, 1, 1], [], []>} : vector<16x32xbf16>, vector<32x16xbf16>, vector<16x16xf32> -> vector<16x16xf32>
    %c0_3 = arith.constant 0 : index
    %c0_4 = arith.constant 0 : index
    %4 = vector.load %arg3[%c0_3, %c0_4] : memref<1x16xf32, #tpu.memory_space<vmem>>, vector<1x16xf32>
    %5 = vector.broadcast %4 : vector<1x16xf32> to vector<16x16xf32>
    %6 = arith.addf %3, %5 : vector<16x16xf32>
    %7 = math.tanh %6 : vector<16x16xf32>
    %8 = arith.truncf %7 : vector<16x16xf32> to vector<16x16xbf16>
    %c0_5 = arith.constant 0 : index
    %c0_6 = arith.constant 0 : index
    %9 = vector.load %arg4[%c0_5, %c0_6] : memref<16x8xbf16, #tpu.memory_space<vmem>>, vector<16x8xbf16>
    %cst_7 = arith.constant dense<0.000000e+00> : vector<16x8xf32>
    %10 = tpu.matmul %8, %9, %cst_7 {dimension_numbers = #tpu.dot_dimension_numbers<[1], [0], [0], [1], [0, 0, 1, 1], [], []>} : vector<16x16xbf16>, vector<16x8xbf16>, vector<16x8xf32> -> vector<16x8xf32>
    %c0_8 = arith.constant 0 : index
    %c0_9 = arith.constant 0 : index
    %11 = vector.load %arg5[%c0_8, %c0_9] : memref<1x8xf32, #tpu.memory_space<vmem>>, vector<1x8xf32>
    %12 = vector.broadcast %11 : vector<1x8xf32> to vector<16x8xf32>
    %13 = arith.addf %10, %12 : vector<16x8xf32>
    %14 = math.tanh %13 : vector<16x8xf32>
    %c0_10 = arith.constant 0 : index
    %c0_11 = arith.constant 0 : index
    %15 = vector.load %arg6[%c0_10, %c0_11] : memref<16x8xf32, #tpu.memory_space<vmem>>, vector<16x8xf32>
    tpu.vector_store %arg6[%c0_10, %c0_11], %14 {strides = array<i32>} : memref<16x8xf32, #tpu.memory_space<vmem>>, vector<16x8xf32>,
    return
  }
  func.func @transform_0(%arg0: i32) -> (i32, i32) {
    %c0_i32 = arith.constant 0 : i32
    %c0_i32_0 = arith.constant 0 : i32
    return %arg0, %c0_i32 : i32, i32
  }
  func.func @transform_1(%arg0: i32) -> (i32, i32) {
    %c0_i32 = arith.constant 0 : i32
    %c0_i32_0 = arith.constant 0 : i32
    %c0_i32_1 = arith.constant 0 : i32
    return %c0_i32, %c0_i32_0 : i32, i32
  }
  func.func @transform_2(%arg0: i32) -> (i32, i32) {
    %c0_i32 = arith.constant 0 : i32
    %c0_i32_0 = arith.constant 0 : i32
    %c0_i32_1 = arith.constant 0 : i32
    return %c0_i32, %c0_i32_0 : i32, i32
  }
  func.func @transform_3(%arg0: i32) -> (i32, i32) {
    %c0_i32 = arith.constant 0 : i32
    %c0_i32_0 = arith.constant 0 : i32
    %c0_i32_1 = arith.constant 0 : i32
    return %c0_i32, %c0_i32_0 : i32, i32
  }
  func.func @transform_4(%arg0: i32) -> (i32, i32) {
    %c0_i32 = arith.constant 0 : i32
    %c0_i32_0 = arith.constant 0 : i32
    %c0_i32_1 = arith.constant 0 : i32
    return %c0_i32, %c0_i32_0 : i32, i32
  }
  func.func @transform_5(%arg0: i32) -> (i32, i32) {
    %c0_i32 = arith.constant 0 : i32
    %c0_i32_0 = arith.constant 0 : i32
    return %arg0, %c0_i32 : i32, i32
  }
}

</mosaic_0001>

<llo_original>
// kernel: mlp_seq_forward.1
$region0: #{mlp_seq_forward.1}
  #allocation0 [shape = 'u32[]', space=smem, size = 0x4, offset = 0x4, fixed_abs, tag = 'smem constant byte address 0x4 - core index']
  #allocation1 [shape = 'u32[144,128]{1,0:T(1,128)}', space=vmem, size = 0x12000, scoped, tag = 'internal scratch']
  %s0 = inlined_call_operand.vmem [shape: f32[16,32], index: 0, kind: input, shape index: {}]
  %s1 = inlined_call_operand.vmem [shape: bf16[32,16], index: 1, kind: input, shape index: {}]
  %s2 = inlined_call_operand.vmem [shape: f32[1,16], index: 2, kind: input, shape index: {}]
  %s3 = inlined_call_operand.vmem [shape: bf16[16,8], index: 3, kind: input, shape index: {}]
  %s4 = inlined_call_operand.vmem [shape: f32[1,8], index: 4, kind: input, shape index: {}]
  %s5 = inlined_call_operand.hbm [shape: f32[16,8], index: 5, kind: output, shape index: {}]
  %s6 = sld [smem:[#allocation0]]
  $region30: #{mlp_seq_forward.1} parent=0
    _
  %s8 = ssub.s32 1, %s6
  %s9 = scalar_select 0, %s8, %s6
  $region1: #{mlp_seq_forward.1} parent=0
    #allocation2 [shape = 'u8[8192]{0}', space=vmem, size = 0x2000, scoped, tag = 'output window, operand 0, single buffered']
    #allocation3 [shape = 's32[1]{0}', space=sflag, size = 0x4, scoped, tag = 'scoped memory for mlp_seq_forward.1']
    %10 = vsyncpa [#allocation3], 0
    // Predicated region
    $region2: #{mlp_seq_forward.1} parent=1 // pred_check
      _
    $region3: #{mlp_seq_forward.1} parent=1 // pred_check_branch
      %12 = sbr.rel (0) target = $region5
    $region4: #{mlp_seq_forward.1} parent=1 // pred_region
      _
    $region5: #{mlp_seq_forward.1} parent=1 // pred_fallthru
      _
    // Predicated region
    $region6: #{mlp_seq_forward.1} parent=1 // pred_check
      _
    $region7: #{mlp_seq_forward.1} parent=1 // pred_check_branch
      %14 = sbr.rel (0) target = $region9
    $region8: #{mlp_seq_forward.1} parent=1 // pred_region
      _
    $region9: #{mlp_seq_forward.1} parent=1 // pred_fallthru
      _
    // Predicated region
    $region10: #{mlp_seq_forward.1} parent=1 // pred_check
      _
    $region11: #{mlp_seq_forward.1} parent=1 // pred_check_branch
      %16 = sbr.rel (0) target = $region13
    $region12: #{mlp_seq_forward.1} parent=1 // pred_region
      _
    $region13: #{mlp_seq_forward.1} parent=1 // pred_fallthru
      _
    // Predicated region
    $region14: #{mlp_seq_forward.1} parent=1 // pred_check
      _
    $region15: #{mlp_seq_forward.1} parent=1 // pred_check_branch
      %18 = sbr.rel (0) target = $region17
    $region16: #{mlp_seq_forward.1} parent=1 // pred_region
      _
    $region17: #{mlp_seq_forward.1} parent=1 // pred_fallthru
      _
    // Predicated region
    $region18: #{mlp_seq_forward.1} parent=1 // pred_check
      _
    $region19: #{mlp_seq_forward.1} parent=1 // pred_check_branch
      %20 = sbr.rel (0) target = $region21
    $region20: #{mlp_seq_forward.1} parent=1 // pred_region
      _
    $region21: #{mlp_seq_forward.1} parent=1 // pred_fallthru
      _
    %v22 = vld [vmem:[%s0] sm:$0xff]
    %v23 = vld [vmem:[%s0 + $0x8] sm:$0xff]
    %v24 = vpack.c.bf16 %v23, %v22
    %v25 = vld [vmem:[%s1] sm:$0xf]
    %v26 = vld [vmem:[%s1 + $0x4] sm:$0xf]
    %v27 = vld [vmem:[%s1 + $0x8] sm:$0xf]
    %v28 = vld [vmem:[%s1 + $0xc] sm:$0xf]
    %v29 = vld [vmem:[%s2] sm:$0x1]
    %v31 = vlaneseq
    %v32 = vshrl.u32 %v31, 7
    %v33 = vsub.s32 0, %v32
    %v34 = vrot.slane %v29, %v33
    %v40 = vunpack.c.l.b16 %v25
    %v41 = vunpack.c.l.b16 %v26
    %v42 = vunpack.c.l.b16 %v27
    %v43 = vunpack.c.l.b16 %v28
    %v44 = vpack.c.b16 %v41, %v40
    %v45 = vpack.c.b16 %v43, %v42
    %vm48 = vcmask 261120
    %v50 = vsel %vm48, %v24, 0
    %52 = vmatprep.subr.bf16.mxu0 0
    %53 = vmatpush1.bf16.msra.mxu0 %v44
    %54 = vmatprep.subr.bf16.mxu0 0
    %55 = vmatpush1.bf16.msra.mxu0 %v45
    %56 = vmatprep.subr.bf16.mxu0 0
    %57 = vmatpush1.bf16.msra.mxu0 0
    %58 = vmatprep.subr.bf16.mxu0 0
    %59 = vmatpush1.bf16.msra.mxu0 0
    %60 = vmatprep.subr.bf16.mxu0 0
    %61 = vmatpush1.bf16.msra.mxu0 0
    %62 = vmatprep.subr.bf16.mxu0 0
    %63 = vmatpush1.bf16.msra.mxu0 0
    %64 = vmatprep.subr.bf16.mxu0 0
    %65 = vmatpush1.bf16.msra.mxu0 0
    %66 = vmatprep.subr.bf16.mxu0 0
    %67 = vmatpush1.bf16.msra.mxu0 0
    %68 = vmatprep.subr.bf16.mxu0 0
    %69 = vmatpush1.bf16.msra.mxu0 0
    %70 = vmatprep.subr.bf16.mxu0 0
    %71 = vmatpush1.bf16.msra.mxu0 0
    %72 = vmatprep.subr.bf16.mxu0 0
    %73 = vmatpush1.bf16.msra.mxu0 0
    %74 = vmatprep.subr.bf16.mxu0 0
    %75 = vmatpush1.bf16.msra.mxu0 0
    %76 = vmatprep.subr.bf16.mxu0 0
    %77 = vmatpush1.bf16.msra.mxu0 0
    %78 = vmatprep.subr.bf16.mxu0 0
    %79 = vmatpush1.bf16.msra.mxu0 0
    %80 = vmatprep.subr.bf16.mxu0 0
    %81 = vmatpush1.bf16.msra.mxu0 0
    %82 = vmatprep.subr.bf16.mxu0 0
    %83 = vmatpush1.bf16.msra.mxu0 0
    %84 = vmatprep.mubr.bf16.mxu0 0
    %85 = vmatmul.mubr.bf16.gmra.mrb[0].mxu0 %v50
    %v86 = vpop.f32.mrb[0].mxu0
    %v87 = vadd.f32 %v34, %v86
    %v88 = vpop.f32.mrb[0].mxu0
    %v89 = vpop.f32.mrb[0].mxu0
    %v90 = vadd.f32 %v34, %v89
    %v91 = vpop.f32.mrb[0].mxu0
    %92 = vdwg.mxu0
    %v93 = vtanh.pop %v87
    %v94 = vtanh.pop %v90
    %v95 = vpack.c.bf16 %v94, %v93
    %v96 = vld [vmem:[%s3] sm:$0xf]
    %v97 = vld [vmem:[%s3 + $0x4] sm:$0xf]
    %v98 = vld [vmem:[%s4] sm:$0x1]
    %v100 = vlaneseq
    %v101 = vshrl.u32 %v100, 7
    %v102 = vsub.s32 0, %v101
    %v103 = vrot.slane %v98, %v102
    %v107 = vunpack.c.l.b16 %v96
    %v108 = vunpack.c.l.b16 %v97
    %v109 = vpack.c.b16 %v108, %v107
    %vm111 = vcmask 130048
    %v113 = vsel %vm111, %v95, 0
    %115 = vmatprep.subr.bf16.mxu0 0
    %116 = vmatpush1.bf16.msra.mxu0 %v109
    %117 = vmatprep.subr.bf16.mxu0 0
    %118 = vmatpush1.bf16.msra.mxu0 0
    %119 = vmatprep.subr.bf16.mxu0 0
    %120 = vmatpush1.bf16.msra.mxu0 0
    %121 = vmatprep.subr.bf16.mxu0 0
    %122 = vmatpush1.bf16.msra.mxu0 0
    %123 = vmatprep.subr.bf16.mxu0 0
    %124 = vmatpush1.bf16.msra.mxu0 0
    %125 = vmatprep.subr.bf16.mxu0 0
    %126 = vmatpush1.bf16.msra.mxu0 0
    %127 = vmatprep.subr.bf16.mxu0 0
    %128 = vmatpush1.bf16.msra.mxu0 0
    %129 = vmatprep.subr.bf16.mxu0 0
    %130 = vmatpush1.bf16.msra.mxu0 0
    %131 = vmatprep.subr.bf16.mxu0 0
    %132 = vmatpush1.bf16.msra.mxu0 0
    %133 = vmatprep.subr.bf16.mxu0 0
    %134 = vmatpush1.bf16.msra.mxu0 0
    %135 = vmatprep.subr.bf16.mxu0 0
    %136 = vmatpush1.bf16.msra.mxu0 0
    %137 = vmatprep.subr.bf16.mxu0 0
    %138 = vmatpush1.bf16.msra.mxu0 0
    %139 = vmatprep.subr.bf16.mxu0 0
    %140 = vmatpush1.bf16.msra.mxu0 0
    %141 = vmatprep.subr.bf16.mxu0 0
    %142 = vmatpush1.bf16.msra.mxu0 0
    %143 = vmatprep.subr.bf16.mxu0 0
    %144 = vmatpush1.bf16.msra.mxu0 0
    %145 = vmatprep.subr.bf16.mxu0 0
    %146 = vmatpush1.bf16.msra.mxu0 0
    %147 = vmatprep.mubr.bf16.mxu0 0
    %148 = vmatmul.mubr.bf16.gmra.mrb[0].mxu0 %v113
    %v149 = vpop.f32.mrb[0].mxu0
    %v150 = vadd.f32 %v103, %v149
    %v151 = vpop.f32.mrb[0].mxu0
    %v152 = vpop.f32.mrb[0].mxu0
    %v153 = vadd.f32 %v103, %v152
    %v154 = vpop.f32.mrb[0].mxu0
    %155 = vdwg.mxu0
    %v156 = vtanh.pop %v150
    %v157 = vtanh.pop %v153
    %vm158 = vcmask 64512
    %159 = vst.msk [vmem:[#allocation2] sm:$0xff] %vm158, %v156
    %160 = vst.msk [vmem:[#allocation2 + $0x8] sm:$0xff] %vm158, %v157
    // Predicated region
    $region22: #{mlp_seq_forward.1} parent=1 // pred_check
      _
    $region23: #{mlp_seq_forward.1} parent=1 // pred_check_branch
      %162 = sbr.rel (0) target = $region25
    $region24: #{mlp_seq_forward.1} parent=1 // pred_region
      %s164 = ssub.s32 256, 256
      %165 = vsyncadd [#allocation3], %s164
      %s166 = sshll.u32 [#allocation2], 4
      %s167 = int_to_ptr.vmem [resolvable:$true] %s166
      %172 = dma.vmem_to_hbm [thread:$0]  %s167, 256, %s5, [#allocation3], 128, 128, 8
    $region25: #{mlp_seq_forward.1} parent=1 // pred_fallthru
      _
    // Predicated region
    $region26: #{mlp_seq_forward.1} parent=1 // pred_check
      _
    $region27: #{mlp_seq_forward.1} parent=1 // pred_check_branch
      %174 = sbr.rel (0) target = $region29
    $region28: #{mlp_seq_forward.1} parent=1 // pred_region
      %175 = dma.done [#allocation3], 256
    $region29: #{mlp_seq_forward.1} parent=1 // pred_fallthru
      _
    %176 = vsyncpa [#allocation3], 1

</llo_original>
